<compile_context>
chip_gen: v5e
topology: v5e:2x2
jax: 0.10.0
libtpu: 0.0.40
codegen_flags: <defaults>
</compile_context>

<pallas_src>
import functools

import jax
import jax.numpy as jnp
from jax.experimental import pallas as pl
from jax.experimental.pallas import tpu as pltpu


def sublayer_connection_kernel(x_ref, s_ref, gamma_ref, beta_ref, o_ref, *, eps, inv_nm1):
    # ---- residual add (f32 math regardless of input dtype) ----
    z = x_ref[...].astype(jnp.float32) + s_ref[...].astype(jnp.float32)   # (TM, D)

    # ---- constant-index param blocks, loaded once per tile ----
    gamma = gamma_ref[...].astype(jnp.float32)                            # (1, D)
    beta = beta_ref[...].astype(jnp.float32)                              # (1, D)

    # ---- PyTorch-style LayerNorm: unbiased std (N-1), scale/shift around (std + eps) ----
    mean = jnp.mean(z, axis=-1, keepdims=True)                            # (TM, 1)
    d = z - mean                                                          # (TM, D)
    var = jnp.sum(d * d, axis=-1, keepdims=True) * inv_nm1                # unbiased variance
    std = jnp.sqrt(var)                                                   # (TM, 1)
    inv = 1.0 / (std + eps)                                               # one (TM,1) divide
    out = gamma * (d * inv) + beta                                        # (TM, D)

    # dropout: identity at inference
    # TODO(synk): training-mode dropout (pltpu.prng_random_bits mask) not implemented.
    o_ref[...] = out.astype(o_ref.dtype)


def sublayer_connection(x, sublayer_out, gamma, beta, *, eps=1e-6, tile_rows=256):
    """x, sublayer_out: (B, L, d_model) -> (B, L, d_model)."""
    B, L, D = x.shape
    M = B * L
    x2 = x.reshape(M, D)
    s2 = sublayer_out.reshape(M, D)
    g2 = gamma.reshape(1, D)
    b2 = beta.reshape(1, D)

    # Large row tile (multiple of 8) to amortize per-grid-step overhead; clamp to M
    # (when clamped, the block spans the full row dim, which is always a legal block).
    tm = min(tile_rows, M)
    grid = (pl.cdiv(M, tm),)
    inv_nm1 = 1.0 / float(max(D - 1, 1))   # torch.std uses the N-1 denominator

    kernel = functools.partial(sublayer_connection_kernel, eps=float(eps), inv_nm1=inv_nm1)

    out2 = pl.pallas_call(
        kernel,
        out_shape=jax.ShapeDtypeStruct((M, D), x.dtype),
        grid_spec=pltpu.PrefetchScalarGridSpec(
            num_scalar_prefetch=0,
            grid=grid,
            in_specs=[
                pl.BlockSpec((tm, D), lambda i: (i, 0)),   # x rows
                pl.BlockSpec((tm, D), lambda i: (i, 0)),   # sublayer(x) rows
                pl.BlockSpec((1, D), lambda i: (0, 0)),    # gamma (a_2)
                pl.BlockSpec((1, D), lambda i: (0, 0)),    # beta  (b_2)
            ],
            out_specs=pl.BlockSpec((tm, D), lambda i: (i, 0)),
        ),
        compiler_params=pltpu.CompilerParams(
            dimension_semantics=("parallel",),
            vmem_limit_bytes=64 * 1024 * 1024,
        ),
    )(x2, s2, g2, b2)

    return out2.reshape(B, L, D)


def reference_sublayer_connection(x, sublayer_out, gamma, beta, eps=1e-6):
    """Pure-JAX reference of the PyTorch forward pass (eval mode)."""
    z = x + sublayer_out
    mean = jnp.mean(z, axis=-1, keepdims=True)
    var = jnp.sum((z - mean) ** 2, axis=-1, keepdims=True) / (z.shape[-1] - 1)
    std = jnp.sqrt(var)
    return gamma * (z - mean) / (std + eps) + beta


if __name__ == "__main__":
    # Small shapes consistent with forward: (batch, seq_len, d_model)
    B, L, D = 2, 8, 32

    key = jax.random.PRNGKey(0)
    kx, kw, kb = jax.random.split(key, 3)

    x = jax.random.normal(kx, (B, L, D), dtype=jnp.float32)

    # A simple stand-in sublayer (linear), evaluated in plain JAX outside the kernel,
    # mirroring forward(x, sublayer) where sublayer(x) is computed by the caller.
    w_sub = jax.random.normal(kw, (D, D), jnp.float32) * (1.0 / jnp.sqrt(D))
    b_sub = jax.random.normal(kb, (D,), jnp.float32) * 0.01
    sublayer_out = x @ w_sub + b_sub

    # LayerNorm parameters (nn.Parameter init: ones / zeros)
    gamma = jnp.ones((D,), jnp.float32)
    beta = jnp.zeros((D,), jnp.float32)

    out = sublayer_connection(x, sublayer_out, gamma, beta)
    out = jax.block_until_ready(out)

    ref = reference_sublayer_connection(x, sublayer_out, gamma, beta)
    assert out.shape == (B, L, D)
    assert jnp.allclose(out, ref, atol=1e-4, rtol=1e-4), "mismatch vs reference"

    print("KERNEL_OK")
</pallas_src>

<mosaic_0001>
module attributes {stable_mosaic.version = 11 : i64} {
  func.func @sublayer_connection_kernel(%arg0: i32, %arg1: memref<16x32xf32, #tpu.memory_space<vmem>>, %arg2: memref<16x32xf32, #tpu.memory_space<vmem>>, %arg3: memref<1x32xf32, #tpu.memory_space<vmem>>, %arg4: memref<1x32xf32, #tpu.memory_space<vmem>>, %arg5: memref<16x32xf32, #tpu.memory_space<vmem>>) attributes {dimension_semantics = [#tpu.dimension_semantics<parallel>], iteration_bounds = array<i64: 1>, scalar_prefetch = 0 : i64, scratch_operands = 0 : i64, tpu.core_type = #tpu.core_type<tc>, window_params = [{transform_indices = @transform_0, window_bounds = array<i64: 16, 32>}, {transform_indices = @transform_1, window_bounds = array<i64: 16, 32>}, {pipeline_mode = #tpu.pipeline_mode<synchronous>, transform_indices = @transform_2, window_bounds = array<i64: 1, 32>}, {pipeline_mode = #tpu.pipeline_mode<synchronous>, transform_indices = @transform_3, window_bounds = array<i64: 1, 32>}, {transform_indices = @transform_4, window_bounds = array<i64: 16, 32>}]} {
    %c0 = arith.constant 0 : index
    %c0_0 = arith.constant 0 : index
    %0 = vector.load %arg1[%c0, %c0_0] : memref<16x32xf32, #tpu.memory_space<vmem>>, vector<16x32xf32>
    %c0_1 = arith.constant 0 : index
    %c0_2 = arith.constant 0 : index
    %1 = vector.load %arg2[%c0_1, %c0_2] : memref<16x32xf32, #tpu.memory_space<vmem>>, vector<16x32xf32>
    %2 = arith.addf %0, %1 : vector<16x32xf32>
    %c0_3 = arith.constant 0 : index
    %c0_4 = arith.constant 0 : index
    %3 = vector.load %arg3[%c0_3, %c0_4] : memref<1x32xf32, #tpu.memory_space<vmem>>, vector<1x32xf32>
    %c0_5 = arith.constant 0 : index
    %c0_6 = arith.constant 0 : index
    %4 = vector.load %arg4[%c0_5, %c0_6] : memref<1x32xf32, #tpu.memory_space<vmem>>, vector<1x32xf32>
    %cst = arith.constant dense<0.000000e+00> : vector<16xf32>
    %5 = vector.multi_reduction <add>, %2, %cst [1] : vector<16x32xf32> to vector<16xf32>
    %6 = vector.shape_cast %5 : vector<16xf32> to vector<16x1xf32>
    %cst_7 = arith.constant 3.200000e+01 : f32
    %7 = vector.broadcast %cst_7 : f32 to vector<16x1xf32>
    %8 = arith.divf %6, %7 : vector<16x1xf32>
    %9 = vector.broadcast %8 : vector<16x1xf32> to vector<16x32xf32>
    %10 = arith.subf %2, %9 : vector<16x32xf32>
    %11 = arith.mulf %10, %10 : vector<16x32xf32>
    %cst_8 = arith.constant dense<0.000000e+00> : vector<16xf32>
    %12 = vector.multi_reduction <add>, %11, %cst_8 [1] : vector<16x32xf32> to vector<16xf32>
    %13 = vector.shape_cast %12 : vector<16xf32> to vector<16x1xf32>
    %cst_9 = arith.constant 0.0322580636 : f32
    %14 = vector.broadcast %cst_9 : f32 to vector<16x1xf32>
    %15 = arith.mulf %13, %14 : vector<16x1xf32>
    %16 = math.sqrt %15 : vector<16x1xf32>
    %cst_10 = arith.constant 9.99999997E-7 : f32
    %17 = vector.broadcast %cst_10 : f32 to vector<16x1xf32>
    %18 = arith.addf %16, %17 : vector<16x1xf32>
    %cst_11 = arith.constant 1.000000e+00 : f32
    %19 = vector.broadcast %cst_11 : f32 to vector<16x1xf32>
    %20 = arith.divf %19, %18 : vector<16x1xf32>
    %21 = vector.broadcast %20 : vector<16x1xf32> to vector<16x32xf32>
    %22 = arith.mulf %10, %21 : vector<16x32xf32>
    %23 = vector.broadcast %3 : vector<1x32xf32> to vector<16x32xf32>
    %24 = arith.mulf %23, %22 : vector<16x32xf32>
    %25 = vector.broadcast %4 : vector<1x32xf32> to vector<16x32xf32>
    %26 = arith.addf %24, %25 : vector<16x32xf32>
    %c0_12 = arith.constant 0 : index
    %c0_13 = arith.constant 0 : index
    %27 = vector.load %arg5[%c0_12, %c0_13] : memref<16x32xf32, #tpu.memory_space<vmem>>, vector<16x32xf32>
    tpu.vector_store %arg5[%c0_12, %c0_13], %26 {strides = array<i32>} : memref<16x32xf32, #tpu.memory_space<vmem>>, vector<16x32xf32>,
    return
  }
  func.func @transform_0(%arg0: i32) -> (i32, i32) {
    %c0_i32 = arith.constant 0 : i32
    %c0_i32_0 = arith.constant 0 : i32
    return %arg0, %c0_i32 : i32, i32
  }
  func.func @transform_1(%arg0: i32) -> (i32, i32) {
    %c0_i32 = arith.constant 0 : i32
    %c0_i32_0 = arith.constant 0 : i32
    return %arg0, %c0_i32 : i32, i32
  }
  func.func @transform_2(%arg0: i32) -> (i32, i32) {
    %c0_i32 = arith.constant 0 : i32
    %c0_i32_0 = arith.constant 0 : i32
    %c0_i32_1 = arith.constant 0 : i32
    return %c0_i32, %c0_i32_0 : i32, i32
  }
  func.func @transform_3(%arg0: i32) -> (i32, i32) {
    %c0_i32 = arith.constant 0 : i32
    %c0_i32_0 = arith.constant 0 : i32
    %c0_i32_1 = arith.constant 0 : i32
    return %c0_i32, %c0_i32_0 : i32, i32
  }
  func.func @transform_4(%arg0: i32) -> (i32, i32) {
    %c0_i32 = arith.constant 0 : i32
    %c0_i32_0 = arith.constant 0 : i32
    return %arg0, %c0_i32 : i32, i32
  }
}

</mosaic_0001>

<llo_original>
// kernel: tpu_custom_call.1
$region0: #{tpu_custom_call.1}
  #allocation0 [shape = 'u32[]', space=smem, size = 0x4, offset = 0x4, fixed_abs, tag = 'smem constant byte address 0x4 - core index']
  #allocation1 [shape = 'u32[72,128]{1,0:T(1,128)}', space=vmem, size = 0x9000, scoped, tag = 'internal scratch']
  %s0 = inlined_call_operand.hbm [shape: f32[16,32], index: 0, kind: input, shape index: {}]
  %s1 = inlined_call_operand.hbm [shape: f32[16,32], index: 1, kind: input, shape index: {}]
  %s2 = inlined_call_operand.vmem [shape: f32[1,32], index: 2, kind: input, shape index: {}]
  %s3 = inlined_call_operand.vmem [shape: f32[1,32], index: 3, kind: input, shape index: {}]
  %s4 = inlined_call_operand.hbm [shape: f32[16,32], index: 4, kind: output, shape index: {}]
  %s5 = sld [smem:[#allocation0]]
  $region34: #{tpu_custom_call.1} parent=0
    _
  %s7 = ssub.s32 1, %s5
  %s8 = scalar_select 0, %s7, %s5
  $region1: #{tpu_custom_call.1} parent=0
    #allocation2 [shape = 'u8[8192]{0}', space=vmem, size = 0x2000, scoped, tag = 'input window, operand 0, single buffered']
    #allocation3 [shape = 's32[1]{0}', space=sflag, size = 0x4, scoped, tag = 'scoped memory for tpu_custom_call.1']
    #allocation4 [shape = 's32[1]{0}', space=sflag, size = 0x4, scoped, tag = 'scoped memory for tpu_custom_call.1']
    #allocation5 [shape = 'u8[8192]{0}', space=vmem, size = 0x2000, scoped, tag = 'input window, operand 1, single buffered']
    #allocation6 [shape = 's32[1]{0}', space=sflag, size = 0x4, scoped, tag = 'scoped memory for tpu_custom_call.1']
    #allocation7 [shape = 'u8[8192]{0}', space=vmem, size = 0x2000, scoped, tag = 'output window, operand 0, single buffered']
    %9 = vsyncpa [#allocation3], 0
    %10 = vsyncpa [#allocation6], 0
    %11 = vsyncpa [#allocation4], 0
    // Predicated region
    $region2: #{tpu_custom_call.1} parent=1 // pred_check
      _
    $region3: #{tpu_custom_call.1} parent=1 // pred_check_branch
      %13 = sbr.rel (0) target = $region5
    $region4: #{tpu_custom_call.1} parent=1 // pred_region
      %15 = vsyncadd [#allocation3], 0
      %s16 = sshll.u32 %s0, 4
      %s17 = int_to_ptr.hbm [resolvable:$true] %s16
      %s18 = sshll.u32 [#allocation2], 4
      %s19 = int_to_ptr.vmem [resolvable:$true] %s18
      %24 = dma.hbm_to_vmem [thread:$0]  %s17, 256, %s19, [#allocation3], 128, 128, 8
    $region5: #{tpu_custom_call.1} parent=1 // pred_fallthru
      _
    // Predicated region
    $region6: #{tpu_custom_call.1} parent=1 // pred_check
      _
    $region7: #{tpu_custom_call.1} parent=1 // pred_check_branch
      %26 = sbr.rel (0) target = $region9
    $region8: #{tpu_custom_call.1} parent=1 // pred_region
      %28 = vsyncadd [#allocation6], 0
      %s29 = sshll.u32 %s1, 4
      %s30 = int_to_ptr.hbm [resolvable:$true] %s29
      %s31 = sshll.u32 [#allocation5], 4
      %s32 = int_to_ptr.vmem [resolvable:$true] %s31
      %37 = dma.hbm_to_vmem [thread:$0]  %s30, 256, %s32, [#allocation6], 128, 128, 8
    $region9: #{tpu_custom_call.1} parent=1 // pred_fallthru
      _
    // Predicated region
    $region10: #{tpu_custom_call.1} parent=1 // pred_check
      _
    $region11: #{tpu_custom_call.1} parent=1 // pred_check_branch
      %39 = sbr.rel (0) target = $region13
    $region12: #{tpu_custom_call.1} parent=1 // pred_region
      _
    $region13: #{tpu_custom_call.1} parent=1 // pred_fallthru
      _
    // Predicated region
    $region14: #{tpu_custom_call.1} parent=1 // pred_check
      _
    $region15: #{tpu_custom_call.1} parent=1 // pred_check_branch
      %41 = sbr.rel (0) target = $region17
    $region16: #{tpu_custom_call.1} parent=1 // pred_region
      _
    $region17: #{tpu_custom_call.1} parent=1 // pred_fallthru
      _
    // Predicated region
    $region18: #{tpu_custom_call.1} parent=1 // pred_check
      _
    $region19: #{tpu_custom_call.1} parent=1 // pred_check_branch
      %43 = sbr.rel (0) target = $region21
    $region20: #{tpu_custom_call.1} parent=1 // pred_region
      %45 = dma.done [#allocation3], 256
    $region21: #{tpu_custom_call.1} parent=1 // pred_fallthru
      _
    // Predicated region
    $region22: #{tpu_custom_call.1} parent=1 // pred_check
      _
    $region23: #{tpu_custom_call.1} parent=1 // pred_check_branch
      %47 = sbr.rel (0) target = $region25
    $region24: #{tpu_custom_call.1} parent=1 // pred_region
      %49 = dma.done [#allocation6], 256
    $region25: #{tpu_custom_call.1} parent=1 // pred_fallthru
      _
    %v50 = vld [vmem:[#allocation2] sm:$0xff]
    %v51 = vld [vmem:[#allocation2 + $0x8] sm:$0xff]
    %v52 = vld [vmem:[#allocation5] sm:$0xff]
    %v53 = vld [vmem:[#allocation5 + $0x8] sm:$0xff]
    %v54 = vadd.f32 %v50, %v52
    %v55 = vadd.f32 %v51, %v53
    %v56 = vld [vmem:[%s2] sm:$0x1]
    %v57 = vld [vmem:[%s3] sm:$0x1]
    %vm58 = vcmask 261120
    %v59 = vsel %vm58, %v54, 0.0
    %60 = vadd.xlane.f32.xlu0 %v59
    %v61 = vpop.xlane.xlu0 %60
    %v62 = vsel %vm58, %v55, 0.0
    %63 = vadd.xlane.f32.xlu0 %v62
    %v64 = vpop.xlane.xlu0 %63
    %v65 = vrcp.pop 32.0
    %v66 = vmul.f32 32.0, %v65
    %v67 = vsub.f32 1.0, %v66
    %v68 = vmul.f32 %v65, %v67
    %v69 = vadd.f32 %v65, %v68
    %vm70 = vweird.f32 %v65
    %v71 = vsel %vm70, %v65, %v69
    %v72 = vmul.f32 %v61, %v71
    %v73 = vmul.f32 %v64, %v71
    %v74 = vsub.f32 %v54, %v72
    %v75 = vsub.f32 %v55, %v73
    %v76 = vmul.f32 %v74, %v74
    %v77 = vmul.f32 %v75, %v75
    %v78 = vsel %vm58, %v76, 0.0
    %79 = vadd.xlane.f32.xlu0 %v78
    %v80 = vpop.xlane.xlu0 %79
    %v81 = vsel %vm58, %v77, 0.0
    %82 = vadd.xlane.f32.xlu0 %v81
    %v83 = vpop.xlane.xlu0 %82
    %v84 = vmul.f32 %v80, 0.032258064
    %v85 = vmul.f32 %v83, 0.032258064
    %v86 = vrsqrt.pop %v84
    %v87 = vmul.f32 %v86, %v84
    %v88 = vmul.f32 %v87, %v86
    %v89 = vmul.f32 0.5, %v88
    %v90 = vsub.f32 1.5, %v89
    %v91 = vmul.f32 %v86, %v90
    %v92 = vmul.f32 %v84, %v91
    %vm93 = vcmp.eq.f32.partialorder %v84, inf
    %v94 = vsel %vm93, %v84, %v92
    %vm95 = vcmp.eq.f32.partialorder %v84, 0.0
    %v96 = vand.u32 %v84, 2147483648
    %v97 = vsel %vm95, %v96, %v94
    %v98 = vrsqrt.pop %v85
    %v99 = vmul.f32 %v98, %v85
    %v100 = vmul.f32 %v99, %v98
    %v101 = vmul.f32 0.5, %v100
    %v102 = vsub.f32 1.5, %v101
    %v103 = vmul.f32 %v98, %v102
    %v104 = vmul.f32 %v85, %v103
    %vm105 = vcmp.eq.f32.partialorder %v85, inf
    %v106 = vsel %vm105, %v85, %v104
    %vm107 = vcmp.eq.f32.partialorder %v85, 0.0
    %v108 = vand.u32 %v85, 2147483648
    %v109 = vsel %vm107, %v108, %v106
    %v110 = vadd.f32 %v97, 1e-06
    %v111 = vadd.f32 %v109, 1e-06
    %v112 = vrcp.pop %v110
    %v113 = vmul.f32 %v110, %v112
    %v114 = vsub.f32 1.0, %v113
    %v115 = vmul.f32 %v112, %v114
    %v116 = vadd.f32 %v112, %v115
    %vm117 = vweird.f32 %v110
    %vm118 = vweird.f32 %v112
    %vm119 = vmor %vm117, %vm118
    %v120 = vsel %vm119, %v112, %v116
    %v121 = vand.u32 2147483647, %v110
    %vm122 = vcmp.eq.f32.partialorder %v121, 8.507059e+37
    %v123 = vand.u32 %v110, 2147483648
    %v124 = vor.u32 1.1754944e-38, %v123
    %v125 = vsel %vm122, %v124, %v120
    %v126 = vmul.f32 1.0, %v125
    %v127 = vrcp.pop %v111
    %v128 = vmul.f32 %v111, %v127
    %v129 = vsub.f32 1.0, %v128
    %v130 = vmul.f32 %v127, %v129
    %v131 = vadd.f32 %v127, %v130
    %vm132 = vweird.f32 %v111
    %vm133 = vweird.f32 %v127
    %vm134 = vmor %vm132, %vm133
    %v135 = vsel %vm134, %v127, %v131
    %v136 = vand.u32 2147483647, %v111
    %vm137 = vcmp.eq.f32.partialorder %v136, 8.507059e+37
    %v138 = vand.u32 %v111, 2147483648
    %v139 = vor.u32 1.1754944e-38, %v138
    %v140 = vsel %vm137, %v139, %v135
    %v141 = vmul.f32 1.0, %v140
    %v142 = vmul.f32 %v74, %v126
    %v143 = vmul.f32 %v75, %v141
    %v145 = vperm.slane %v56, 0
    %v147 = vmul.f32 %v145, %v142
    %v148 = vmul.f32 %v145, %v143
    %v150 = vperm.slane %v57, 0
    %v152 = vadd.f32 %v147, %v150
    %v153 = vadd.f32 %v148, %v150
    %154 = vst.msk [vmem:[#allocation7] sm:$0xff] %vm58, %v152
    %155 = vst.msk [vmem:[#allocation7 + $0x8] sm:$0xff] %vm58, %v153
    // Predicated region
    $region26: #{tpu_custom_call.1} parent=1 // pred_check
      _
    $region27: #{tpu_custom_call.1} parent=1 // pred_check_branch
      %157 = sbr.rel (0) target = $region29
    $region28: #{tpu_custom_call.1} parent=1 // pred_region
      %159 = vsyncadd [#allocation4], 0
      %s160 = sshll.u32 [#allocation7], 4
      %s161 = int_to_ptr.vmem [resolvable:$true] %s160
      %s162 = sshll.u32 %s4, 4
      %s163 = int_to_ptr.hbm [resolvable:$true] %s162
      %168 = dma.vmem_to_hbm [thread:$0]  %s161, 256, %s163, [#allocation4], 128, 128, 8
    $region29: #{tpu_custom_call.1} parent=1 // pred_fallthru
      _
    // Predicated region
    $region30: #{tpu_custom_call.1} parent=1 // pred_check
      _
    $region31: #{tpu_custom_call.1} parent=1 // pred_check_branch
      %170 = sbr.rel (0) target = $region33
    $region32: #{tpu_custom_call.1} parent=1 // pred_region
      %172 = dma.done [#allocation4], 256
    $region33: #{tpu_custom_call.1} parent=1 // pred_fallthru
      _
    %173 = vsyncpa [#allocation3], 1
    %174 = vsyncpa [#allocation6], 1
    %175 = vsyncpa [#allocation4], 1

</llo_original>
